<compile_context>
chip_gen: v6e
topology: v6e:2x2x1
jax: 0.10.0
libtpu: 0.0.40
codegen_flags: <defaults>
</compile_context>

<pallas_src>
import functools

import jax
import jax.numpy as jnp
from jax.experimental import pallas as pl
from jax.experimental.pallas import tpu as pltpu


def _round_up(x, m):
    return ((x + m - 1) // m) * m


def _pad2d(a, rows, cols):
    return jnp.pad(a, ((0, rows - a.shape[0]), (0, cols - a.shape[1])))


def _pick_tile(dim, cap):
    """Largest multiple of 128 that divides `dim` (itself a multiple of 128)
    and does not exceed `cap`."""
    t = min(cap, dim)
    t -= t % 128
    while dim % t:
        t -= 128
    return t


def _matmul_bias_act_kernel(a_ref, b_ref, bias_ref, o_ref, acc_ref, *, relu):
    """One (tm, tn) output tile of  act(A @ B + bias).

    Grid = (M/tm, N/tn, K/tk); K is the reduction axis, accumulated in an f32
    VMEM scratch. Bias + activation + downcast are fused into the finalize.
    """
    k = pl.program_id(2)

    @pl.when(k == 0)
    def _():
        acc_ref[...] = jnp.zeros_like(acc_ref)

    acc_ref[...] += jnp.dot(a_ref[...], b_ref[...],
                            preferred_element_type=jnp.float32)

    @pl.when(k == pl.num_programs(2) - 1)
    def _():
        out = acc_ref[...] + bias_ref[...]          # (1, tn) f32 broadcast
        if relu:
            out = jnp.maximum(out, 0.0)
        o_ref[...] = out.astype(o_ref.dtype)


def fused_matmul(a, b, bias, *, relu, out_dtype):
    """act(a @ b + bias) with bf16 MXU inputs / f32 accumulation.

    All dimensions must already be multiples of 128 (caller pads)."""
    M, K = a.shape
    K2, N = b.shape
    assert K == K2 and bias.shape == (1, N)
    tm = _pick_tile(M, 256)   # row tile (>=128, MXU-filling)
    tn = _pick_tile(N, 256)   # lane-dense output tile
    tk = _pick_tile(K, 512)   # reduction tile

    kernel = functools.partial(_matmul_bias_act_kernel, relu=relu)
    return pl.pallas_call(
        kernel,
        out_shape=jax.ShapeDtypeStruct((M, N), out_dtype),
        grid=(M // tm, N // tn, K // tk),
        in_specs=[
            pl.BlockSpec((tm, tk), lambda i, j, k: (i, k)),
            pl.BlockSpec((tk, tn), lambda i, j, k: (k, j)),
            pl.BlockSpec((1, tn), lambda i, j, k: (0, j)),
        ],
        out_specs=pl.BlockSpec((tm, tn), lambda i, j, k: (i, j)),
        scratch_shapes=[pltpu.VMEM((tm, tn), jnp.float32)],
        compiler_params=pltpu.CompilerParams(
            dimension_semantics=("parallel", "parallel", "arbitrary")),
    )(a, b, bias)


def gcn_forward(x, adj, params, dropout=0.5):
    """Forward of GCN(nfeat, nhid1, nhid2, dropout) in eval mode."""
    N, nfeat = x.shape
    nhid1 = params["w1"].shape[1]
    nhid2 = params["w2"].shape[1]

    # Pad everything to lane-dense (multiple-of-128) dims once, up front.
    np_ = _round_up(N, 128)
    f0 = _round_up(nfeat, 128)
    f1 = _round_up(nhid1, 128)
    f2 = _round_up(nhid2, 128)

    xp = _pad2d(x, np_, f0).astype(jnp.bfloat16)
    adjp = _pad2d(adj, np_, np_).astype(jnp.bfloat16)
    w1p = _pad2d(params["w1"], f0, f1).astype(jnp.bfloat16)
    w2p = _pad2d(params["w2"], f1, f2).astype(jnp.bfloat16)
    b1p = _pad2d(params["b1"], 1, f1).astype(jnp.float32)
    b2p = _pad2d(params["b2"], 1, f2).astype(jnp.float32)
    zb1 = jnp.zeros((1, f1), jnp.float32)
    zb2 = jnp.zeros((1, f2), jnp.float32)

    # ---- layer 1: z = relu(adj @ (x @ W1) + b1) ----
    support1 = fused_matmul(xp, w1p, zb1, relu=False, out_dtype=jnp.bfloat16)
    z = fused_matmul(adjp, support1, b1p, relu=True, out_dtype=jnp.bfloat16)
    # TODO(synk): F.dropout(training=True) is stochastic; identity in eval mode
    # (could be added in-kernel with pltpu.prng_seed / prng_random_bits).

    # ---- layer 2: out = relu(adj @ (z @ W2) + b2) ----
    support2 = fused_matmul(z, w2p, zb2, relu=False, out_dtype=jnp.bfloat16)
    out = fused_matmul(adjp, support2, b2p, relu=True, out_dtype=jnp.float32)

    return out[:N, :nhid2]


def init_params(key, nfeat, nhid1, nhid2):
    """Deterministic init matching Kipf GraphConvolution.reset_parameters:
       uniform(-stdv, stdv) with stdv = 1/sqrt(out_features)."""
    k1, k2, k3, k4 = jax.random.split(key, 4)
    stdv1 = 1.0 / float(jnp.sqrt(float(nhid1)))
    stdv2 = 1.0 / float(jnp.sqrt(float(nhid2)))
    return {
        "w1": jax.random.uniform(k1, (nfeat, nhid1), jnp.float32,
                                 minval=-stdv1, maxval=stdv1),
        "b1": jax.random.uniform(k2, (1, nhid1), jnp.float32,
                                 minval=-stdv1, maxval=stdv1),
        "w2": jax.random.uniform(k3, (nhid1, nhid2), jnp.float32,
                                 minval=-stdv2, maxval=stdv2),
        "b2": jax.random.uniform(k4, (1, nhid2), jnp.float32,
                                 minval=-stdv2, maxval=stdv2),
    }


if __name__ == "__main__":
    key = jax.random.PRNGKey(0)
    N, nfeat, nhid1, nhid2, dropout = 256, 128, 128, 64, 0.5

    kx, ka, kp = jax.random.split(key, 3)
    x = jax.random.normal(kx, (N, nfeat), jnp.float32)

    # Symmetric, normalized adjacency with self-loops (typical GCN input).
    a = (jax.random.uniform(ka, (N, N)) > 0.9).astype(jnp.float32)
    a = jnp.clip(a + a.T + jnp.eye(N, dtype=jnp.float32), 0.0, 1.0)
    d_inv_sqrt = 1.0 / jnp.sqrt(a.sum(axis=1))
    adj = a * d_inv_sqrt[:, None] * d_inv_sqrt[None, :]

    params = init_params(kp, nfeat, nhid1, nhid2)

    out = gcn_forward(x, adj, params, dropout)
    out = jax.block_until_ready(out)
    assert out.shape == (N, nhid2)

    # Reference matching the kernel's dtype pipeline (bf16 MXU inputs,
    # f32 accumulation, bf16 inter-layer activation).
    bf, f32 = jnp.bfloat16, jnp.float32
    s1 = jnp.dot(x.astype(bf), params["w1"].astype(bf),
                 preferred_element_type=f32)
    z_ref = jnp.maximum(
        jnp.dot(adj.astype(bf), s1.astype(bf), preferred_element_type=f32)
        + params["b1"], 0.0).astype(bf)
    s2 = jnp.dot(z_ref, params["w2"].astype(bf), preferred_element_type=f32)
    ref = jnp.maximum(
        jnp.dot(adj.astype(bf), s2.astype(bf), preferred_element_type=f32)
        + params["b2"], 0.0)

    assert jnp.allclose(out, ref, atol=2e-2, rtol=2e-2)

    print("KERNEL_OK")
</pallas_src>

<mosaic_0001>
module attributes {stable_mosaic.version = 11 : i64} {
  func.func @_matmul_bias_act_kernel(%arg0: i32, %arg1: i32, %arg2: i32, %arg3: memref<256x128xbf16, #tpu.memory_space<vmem>>, %arg4: memref<128x128xbf16, #tpu.memory_space<vmem>>, %arg5: memref<1x128xf32, #tpu.memory_space<vmem>>, %arg6: memref<256x128xbf16, #tpu.memory_space<vmem>>, %arg7: memref<256x128xf32, #tpu.memory_space<vmem>>) attributes {dimension_semantics = [#tpu.dimension_semantics<parallel>, #tpu.dimension_semantics<parallel>, #tpu.dimension_semantics<arbitrary>], iteration_bounds = array<i64: 1, 1, 1>, scalar_prefetch = 0 : i64, scratch_operands = 1 : i64, tpu.core_type = #tpu.core_type<tc>, window_params = [{transform_indices = @transform_0, window_bounds = array<i64: 256, 128>}, {transform_indices = @transform_1, window_bounds = array<i64: 128, 128>}, {transform_indices = @transform_2, window_bounds = array<i64: 1, 128>}, {transform_indices = @transform_3, window_bounds = array<i64: 256, 128>}]} {
    %c0_i32 = arith.constant 0 : i32
    %0 = arith.cmpi eq, %arg2, %c0_i32 : i32
    %1 = arith.extui %0 : i1 to i32
    %c0_i32_0 = arith.constant 0 : i32
    %2 = arith.cmpi ne, %1, %c0_i32_0 : i32
    scf.if %2 {
      %cst_10 = arith.constant 0.000000e+00 : f32
      %12 = vector.broadcast %cst_10 : f32 to vector<256x128xf32>
      %c0_11 = arith.constant 0 : index
      %c0_12 = arith.constant 0 : index
      %13 = vector.load %arg7[%c0_11, %c0_12] : memref<256x128xf32, #tpu.memory_space<vmem>>, vector<256x128xf32>
      tpu.vector_store %arg7[%c0_11, %c0_12], %12 {strides = array<i32>} : memref<256x128xf32, #tpu.memory_space<vmem>>, vector<256x128xf32>,
    } else {
    }
    %c0 = arith.constant 0 : index
    %c0_1 = arith.constant 0 : index
    %3 = vector.load %arg7[%c0, %c0_1] : memref<256x128xf32, #tpu.memory_space<vmem>>, vector<256x128xf32>
    %c0_2 = arith.constant 0 : index
    %c0_3 = arith.constant 0 : index
    %4 = vector.load %arg3[%c0_2, %c0_3] : memref<256x128xbf16, #tpu.memory_space<vmem>>, vector<256x128xbf16>
    %c0_4 = arith.constant 0 : index
    %c0_5 = arith.constant 0 : index
    %5 = vector.load %arg4[%c0_4, %c0_5] : memref<128x128xbf16, #tpu.memory_space<vmem>>, vector<128x128xbf16>
    %cst = arith.constant dense<0.000000e+00> : vector<256x128xf32>
    %6 = tpu.matmul %4, %5, %cst {dimension_numbers = #tpu.dot_dimension_numbers<[1], [0], [0], [1], [0, 0, 1, 1], [], []>} : vector<256x128xbf16>, vector<128x128xbf16>, vector<256x128xf32> -> vector<256x128xf32>
    %7 = arith.addf %3, %6 : vector<256x128xf32>
    %c0_6 = arith.constant 0 : index
    %c0_7 = arith.constant 0 : index
    %8 = vector.load %arg7[%c0_6, %c0_7] : memref<256x128xf32, #tpu.memory_space<vmem>>, vector<256x128xf32>
    tpu.vector_store %arg7[%c0_6, %c0_7], %7 {strides = array<i32>} : memref<256x128xf32, #tpu.memory_space<vmem>>, vector<256x128xf32>,
    %c0_i32_8 = arith.constant 0 : i32
    %9 = arith.cmpi eq, %arg2, %c0_i32_8 : i32
    %10 = arith.extui %9 : i1 to i32
    %c0_i32_9 = arith.constant 0 : i32
    %11 = arith.cmpi ne, %10, %c0_i32_9 : i32
    scf.if %11 {
      %c0_10 = arith.constant 0 : index
      %c0_11 = arith.constant 0 : index
      %12 = vector.load %arg7[%c0_10, %c0_11] : memref<256x128xf32, #tpu.memory_space<vmem>>, vector<256x128xf32>
      %c0_12 = arith.constant 0 : index
      %c0_13 = arith.constant 0 : index
      %13 = vector.load %arg5[%c0_12, %c0_13] : memref<1x128xf32, #tpu.memory_space<vmem>>, vector<1x128xf32>
      %14 = vector.broadcast %13 : vector<1x128xf32> to vector<256x128xf32>
      %15 = arith.addf %12, %14 : vector<256x128xf32>
      %16 = arith.truncf %15 : vector<256x128xf32> to vector<256x128xbf16>
      %c0_14 = arith.constant 0 : index
      %c0_15 = arith.constant 0 : index
      %17 = vector.load %arg6[%c0_14, %c0_15] : memref<256x128xbf16, #tpu.memory_space<vmem>>, vector<256x128xbf16>
      tpu.vector_store %arg6[%c0_14, %c0_15], %16 {strides = array<i32>} : memref<256x128xbf16, #tpu.memory_space<vmem>>, vector<256x128xbf16>,
    } else {
    }
    return
  }
  func.func @transform_0(%arg0: i32, %arg1: i32, %arg2: i32) -> (i32, i32) {
    %c0_i32 = arith.constant 0 : i32
    return %arg0, %arg2 : i32, i32
  }
  func.func @transform_1(%arg0: i32, %arg1: i32, %arg2: i32) -> (i32, i32) {
    %c0_i32 = arith.constant 0 : i32
    return %arg2, %arg1 : i32, i32
  }
  func.func @transform_2(%arg0: i32, %arg1: i32, %arg2: i32) -> (i32, i32) {
    %c0_i32 = arith.constant 0 : i32
    %c0_i32_0 = arith.constant 0 : i32
    return %c0_i32, %arg1 : i32, i32
  }
  func.func @transform_3(%arg0: i32, %arg1: i32, %arg2: i32) -> (i32, i32) {
    %c0_i32 = arith.constant 0 : i32
    return %arg0, %arg1 : i32, i32
  }
}

</mosaic_0001>

<llo_original>
// kernel: tpu_custom_call.1
$region0: #{tpu_custom_call.1}
  #allocation0 [shape = 'u32[]', space=smem, size = 0x4, offset = 0x4, fixed_abs, tag = 'smem constant byte address 0x4 - core index']
  #allocation1 [shape = 'u32[144,128]{1,0:T(1,128)}', space=vmem, size = 0x12000, scoped, tag = 'internal scratch']
  #allocation2 [shape = 'f32[256,128]{1,0:T(8,128)}', space=vmem, size = 0x20000, scoped, tag = 'scratch operand']
  %s0 = inlined_call_operand.hbm [shape: bf16[256,128], index: 0, kind: input, shape index: {}]
  %s1 = inlined_call_operand.hbm [shape: bf16[128,128], index: 1, kind: input, shape index: {}]
  %s2 = inlined_call_operand.vmem [shape: f32[1,128], index: 2, kind: input, shape index: {}]
  %s3 = inlined_call_operand.hbm [shape: bf16[256,128], index: 3, kind: output, shape index: {}]
  %s4 = sld [smem:[#allocation0]]
  $region38: #{tpu_custom_call.1} parent=0
    _
  %s6 = ssub.s32 1, %s4
  %s7 = scalar_select 0, %s6, %s4
  $region1: #{tpu_custom_call.1} parent=0
    #allocation3 [shape = 'u8[65536]{0}', space=vmem, size = 0x10000, scoped, tag = 'input window, operand 0, single buffered']
    #allocation4 [shape = 's32[1]{0}', space=sflag, size = 0x4, scoped, tag = 'scoped memory for tpu_custom_call.1']
    #allocation5 [shape = 's32[1]{0}', space=sflag, size = 0x4, scoped, tag = 'scoped memory for tpu_custom_call.1']
    #allocation6 [shape = 'u8[32768]{0}', space=vmem, size = 0x8000, scoped, tag = 'input window, operand 1, single buffered']
    #allocation7 [shape = 's32[1]{0}', space=sflag, size = 0x4, scoped, tag = 'scoped memory for tpu_custom_call.1']
    #allocation8 [shape = 'u8[65536]{0}', space=vmem, size = 0x10000, scoped, tag = 'output window, operand 0, single buffered']
    %8 = vsyncpa [#allocation4], 0
    %9 = vsyncpa [#allocation7], 0
    %10 = vsyncpa [#allocation5], 0
    // Predicated region
    $region2: #{tpu_custom_call.1} parent=1 // pred_check
      _
    $region3: #{tpu_custom_call.1} parent=1 // pred_check_branch
      %12 = sbr.rel (0) target = $region5
    $region4: #{tpu_custom_call.1} parent=1 // pred_region
      %s14 = ssub.s32 2048, 2048
      %15 = vsyncadd [#allocation4], %s14
      %s16 = sshll.u32 [#allocation3], 4
      %s17 = int_to_ptr.vmem [resolvable:$true] %s16
      %22 = dma.hbm_to_vmem [thread:$0]  %s0, 2048, %s17, [#allocation4], 64, 64, 4
    $region5: #{tpu_custom_call.1} parent=1 // pred_fallthru
      _
    // Predicated region
    $region6: #{tpu_custom_call.1} parent=1 // pred_check
      _
    $region7: #{tpu_custom_call.1} parent=1 // pred_check_branch
      %24 = sbr.rel (0) target = $region9
    $region8: #{tpu_custom_call.1} parent=1 // pred_region
      %s26 = ssub.s32 1024, 1024
      %27 = vsyncadd [#allocation7], %s26
      %s28 = sshll.u32 [#allocation6], 4
      %s29 = int_to_ptr.vmem [resolvable:$true] %s28
      %34 = dma.hbm_to_vmem [thread:$0]  %s1, 1024, %s29, [#allocation7], 64, 64, 4
    $region9: #{tpu_custom_call.1} parent=1 // pred_fallthru
      _
    // Predicated region
    $region10: #{tpu_custom_call.1} parent=1 // pred_check
      _
    $region11: #{tpu_custom_call.1} parent=1 // pred_check_branch
      %36 = sbr.rel (0) target = $region13
    $region12: #{tpu_custom_call.1} parent=1 // pred_region
      _
    $region13: #{tpu_custom_call.1} parent=1 // pred_fallthru
      _
    // Predicated region
    $region14: #{tpu_custom_call.1} parent=1 // pred_check
      _
    $region15: #{tpu_custom_call.1} parent=1 // pred_check_branch
      %38 = sbr.rel (0) target = $region17
    $region16: #{tpu_custom_call.1} parent=1 // pred_region
      %39 = dma.done [#allocation4], 2048
    $region17: #{tpu_custom_call.1} parent=1 // pred_fallthru
      _
    // Predicated region
    $region18: #{tpu_custom_call.1} parent=1 // pred_check
      _
    $region19: #{tpu_custom_call.1} parent=1 // pred_check_branch
      %41 = sbr.rel (0) target = $region21
    $region20: #{tpu_custom_call.1} parent=1 // pred_region
      %42 = dma.done [#allocation7], 1024
    $region21: #{tpu_custom_call.1} parent=1 // pred_fallthru
      _
    %p44 = scmp.eq.s32.totalorder 0, 0
    // Predicated region
    $region22: #{tpu_custom_call.1} parent=1 // pred_check
      %p45 = pneg %p44
    $region23: #{tpu_custom_call.1} parent=1 // pred_check_branch
      %47 = sbr.rel (%p45) target = $region25
    $region24: #{tpu_custom_call.1} parent=1 // pred_region
      %48 = vst [vmem:[#allocation2] sm:$0xff] 0.0
      %49 = vst [vmem:[#allocation2 + $0x8] sm:$0xff] 0.0
      %50 = vst [vmem:[#allocation2 + $0x10] sm:$0xff] 0.0
      %51 = vst [vmem:[#allocation2 + $0x18] sm:$0xff] 0.0
      %52 = vst [vmem:[#allocation2 + $0x20] sm:$0xff] 0.0
      %53 = vst [vmem:[#allocation2 + $0x28] sm:$0xff] 0.0
      %54 = vst [vmem:[#allocation2 + $0x30] sm:$0xff] 0.0
      %55 = vst [vmem:[#allocation2 + $0x38] sm:$0xff] 0.0
      %56 = vst [vmem:[#allocation2 + $0x40] sm:$0xff] 0.0
      %57 = vst [vmem:[#allocation2 + $0x48] sm:$0xff] 0.0
      %58 = vst [vmem:[#allocation2 + $0x50] sm:$0xff] 0.0
      %59 = vst [vmem:[#allocation2 + $0x58] sm:$0xff] 0.0
      %60 = vst [vmem:[#allocation2 + $0x60] sm:$0xff] 0.0
      %61 = vst [vmem:[#allocation2 + $0x68] sm:$0xff] 0.0
      %62 = vst [vmem:[#allocation2 + $0x70] sm:$0xff] 0.0
      %63 = vst [vmem:[#allocation2 + $0x78] sm:$0xff] 0.0
      %64 = vst [vmem:[#allocation2 + $0x80] sm:$0xff] 0.0
      %65 = vst [vmem:[#allocation2 + $0x88] sm:$0xff] 0.0
      %66 = vst [vmem:[#allocation2 + $0x90] sm:$0xff] 0.0
      %67 = vst [vmem:[#allocation2 + $0x98] sm:$0xff] 0.0
      %68 = vst [vmem:[#allocation2 + $0xa0] sm:$0xff] 0.0
      %69 = vst [vmem:[#allocation2 + $0xa8] sm:$0xff] 0.0
      %70 = vst [vmem:[#allocation2 + $0xb0] sm:$0xff] 0.0
      %71 = vst [vmem:[#allocation2 + $0xb8] sm:$0xff] 0.0
      %72 = vst [vmem:[#allocation2 + $0xc0] sm:$0xff] 0.0
      %73 = vst [vmem:[#allocation2 + $0xc8] sm:$0xff] 0.0
      %74 = vst [vmem:[#allocation2 + $0xd0] sm:$0xff] 0.0
      %75 = vst [vmem:[#allocation2 + $0xd8] sm:$0xff] 0.0
      %76 = vst [vmem:[#allocation2 + $0xe0] sm:$0xff] 0.0
      %77 = vst [vmem:[#allocation2 + $0xe8] sm:$0xff] 0.0
      %78 = vst [vmem:[#allocation2 + $0xf0] sm:$0xff] 0.0
      %79 = vst [vmem:[#allocation2 + $0xf8] sm:$0xff] 0.0
    $region25: #{tpu_custom_call.1} parent=1 // pred_fallthru
      _
    %v80 = vld [vmem:[#allocation2] sm:$0xff]
    %v81 = vld [vmem:[#allocation2 + $0x8] sm:$0xff]
    %v82 = vld [vmem:[#allocation2 + $0x10] sm:$0xff]
    %v83 = vld [vmem:[#allocation2 + $0x18] sm:$0xff]
    %v84 = vld [vmem:[#allocation2 + $0x20] sm:$0xff]
    %v85 = vld [vmem:[#allocation2 + $0x28] sm:$0xff]
    %v86 = vld [vmem:[#allocation2 + $0x30] sm:$0xff]
    %v87 = vld [vmem:[#allocation2 + $0x38] sm:$0xff]
    %v88 = vld [vmem:[#allocation2 + $0x40] sm:$0xff]
    %v89 = vld [vmem:[#allocation2 + $0x48] sm:$0xff]
    %v90 = vld [vmem:[#allocation2 + $0x50] sm:$0xff]
    %v91 = vld [vmem:[#allocation2 + $0x58] sm:$0xff]
    %v92 = vld [vmem:[#allocation2 + $0x60] sm:$0xff]
    %v93 = vld [vmem:[#allocation2 + $0x68] sm:$0xff]
    %v94 = vld [vmem:[#allocation2 + $0x70] sm:$0xff]
    %v95 = vld [vmem:[#allocation2 + $0x78] sm:$0xff]
    %v96 = vld [vmem:[#allocation2 + $0x80] sm:$0xff]
    %v97 = vld [vmem:[#allocation2 + $0x88] sm:$0xff]
    %v98 = vld [vmem:[#allocation2 + $0x90] sm:$0xff]
    %v99 = vld [vmem:[#allocation2 + $0x98] sm:$0xff]
    %v100 = vld [vmem:[#allocation2 + $0xa0] sm:$0xff]
    %v101 = vld [vmem:[#allocation2 + $0xa8] sm:$0xff]
    %v102 = vld [vmem:[#allocation2 + $0xb0] sm:$0xff]
    %v103 = vld [vmem:[#allocation2 + $0xb8] sm:$0xff]
    %v104 = vld [vmem:[#allocation2 + $0xc0] sm:$0xff]
    %v105 = vld [vmem:[#allocation2 + $0xc8] sm:$0xff]
    %v106 = vld [vmem:[#allocation2 + $0xd0] sm:$0xff]
    %v107 = vld [vmem:[#allocation2 + $0xd8] sm:$0xff]
    %v108 = vld [vmem:[#allocation2 + $0xe0] sm:$0xff]
    %v109 = vld [vmem:[#allocation2 + $0xe8] sm:$0xff]
    %v110 = vld [vmem:[#allocation2 + $0xf0] sm:$0xff]
    %v111 = vld [vmem:[#allocation2 + $0xf8] sm:$0xff]
    %v112 = vld [vmem:[#allocation3] sm:$0xf]
    %v113 = vld [vmem:[#allocation3 + $0x4] sm:$0xf]
    %v114 = vld [vmem:[#allocation3 + $0x8] sm:$0xf]
    %v115 = vld [vmem:[#allocation3 + $0xc] sm:$0xf]
    %v116 = vld [vmem:[#allocation3 + $0x10] sm:$0xf]
    %v117 = vld [vmem:[#allocation3 + $0x14] sm:$0xf]
    %v118 = vld [vmem:[#allocation3 + $0x18] sm:$0xf]
    %v119 = vld [vmem:[#allocation3 + $0x1c] sm:$0xf]
    %v120 = vld [vmem:[#allocation3 + $0x20] sm:$0xf]
    %v121 = vld [vmem:[#allocation3 + $0x24] sm:$0xf]
    %v122 = vld [vmem:[#allocation3 + $0x28] sm:$0xf]
    %v123 = vld [vmem:[#allocation3 + $0x2c] sm:$0xf]
    %v124 = vld [vmem:[#allocation3 + $0x30] sm:$0xf]
    %v125 = vld [vmem:[#allocation3 + $0x34] sm:$0xf]
    %v126 = vld [vmem:[#allocation3 + $0x38] sm:$0xf]
    %v127 = vld [vmem:[#allocation3 + $0x3c] sm:$0xf]
    %v128 = vld [vmem:[#allocation3 + $0x40] sm:$0xf]
    %v129 = vld [vmem:[#allocation3 + $0x44] sm:$0xf]
    %v130 = vld [vmem:[#allocation3 + $0x48] sm:$0xf]
    %v131 = vld [vmem:[#allocation3 + $0x4c] sm:$0xf]
    %v132 = vld [vmem:[#allocation3 + $0x50] sm:$0xf]
    %v133 = vld [vmem:[#allocation3 + $0x54] sm:$0xf]
    %v134 = vld [vmem:[#allocation3 + $0x58] sm:$0xf]
    %v135 = vld [vmem:[#allocation3 + $0x5c] sm:$0xf]
    %v136 = vld [vmem:[#allocation3 + $0x60] sm:$0xf]
    %v137 = vld [vmem:[#allocation3 + $0x64] sm:$0xf]
    %v138 = vld [vmem:[#allocation3 + $0x68] sm:$0xf]
    %v139 = vld [vmem:[#allocation3 + $0x6c] sm:$0xf]
    %v140 = vld [vmem:[#allocation3 + $0x70] sm:$0xf]
    %v141 = vld [vmem:[#allocation3 + $0x74] sm:$0xf]
    %v142 = vld [vmem:[#allocation3 + $0x78] sm:$0xf]
    %v143 = vld [vmem:[#allocation3 + $0x7c] sm:$0xf]
    %v144 = vld [vmem:[#allocation6] sm:$0xf]
    %v145 = vld [vmem:[#allocation6 + $0x4] sm:$0xf]
    %v146 = vld [vmem:[#allocation6 + $0x8] sm:$0xf]
    %v147 = vld [vmem:[#allocation6 + $0xc] sm:$0xf]
    %v148 = vld [vmem:[#allocation6 + $0x10] sm:$0xf]
    %v149 = vld [vmem:[#allocation6 + $0x14] sm:$0xf]
    %v150 = vld [vmem:[#allocation6 + $0x18] sm:$0xf]
    %v151 = vld [vmem:[#allocation6 + $0x1c] sm:$0xf]
    %v152 = vld [vmem:[#allocation6 + $0x20] sm:$0xf]
    %v153 = vld [vmem:[#allocation6 + $0x24] sm:$0xf]
    %v154 = vld [vmem:[#allocation6 + $0x28] sm:$0xf]
    %v155 = vld [vmem:[#allocation6 + $0x2c] sm:$0xf]
    %v156 = vld [vmem:[#allocation6 + $0x30] sm:$0xf]
    %v157 = vld [vmem:[#allocation6 + $0x34] sm:$0xf]
    %v158 = vld [vmem:[#allocation6 + $0x38] sm:$0xf]
    %v159 = vld [vmem:[#allocation6 + $0x3c] sm:$0xf]
    %v192 = vunpack.c.l.b16 %v112
    %v193 = vunpack.c.l.b16 %v113
    %v194 = vunpack.c.l.b16 %v114
    %v195 = vunpack.c.l.b16 %v115
    %v196 = vunpack.c.l.b16 %v116
    %v197 = vunpack.c.l.b16 %v117
    %v198 = vunpack.c.l.b16 %v118
    %v199 = vunpack.c.l.b16 %v119
    %v200 = vunpack.c.l.b16 %v120
    %v201 = vunpack.c.l.b16 %v121
    %v202 = vunpack.c.l.b16 %v122
    %v203 = vunpack.c.l.b16 %v123
    %v204 = vunpack.c.l.b16 %v124
    %v205 = vunpack.c.l.b16 %v125
    %v206 = vunpack.c.l.b16 %v126
    %v207 = vunpack.c.l.b16 %v127
    %v208 = vunpack.c.l.b16 %v128
    %v209 = vunpack.c.l.b16 %v129
    %v210 = vunpack.c.l.b16 %v130
    %v211 = vunpack.c.l.b16 %v131
    %v212 = vunpack.c.l.b16 %v132
    %v213 = vunpack.c.l.b16 %v133
    %v214 = vunpack.c.l.b16 %v134
    %v215 = vunpack.c.l.b16 %v135
    %v216 = vunpack.c.l.b16 %v136
    %v217 = vunpack.c.l.b16 %v137
    %v218 = vunpack.c.l.b16 %v138
    %v219 = vunpack.c.l.b16 %v139
    %v220 = vunpack.c.l.b16 %v140
    %v221 = vunpack.c.l.b16 %v141
    %v222 = vunpack.c.l.b16 %v142
    %v223 = vunpack.c.l.b16 %v143
    %v224 = vpack.c.b16 %v193, %v192
    %v225 = vpack.c.b16 %v195, %v194
    %v226 = vpack.c.b16 %v197, %v196
    %v227 = vpack.c.b16 %v199, %v198
    %v228 = vpack.c.b16 %v201, %v200
    %v229 = vpack.c.b16 %v203, %v202
    %v230 = vpack.c.b16 %v205, %v204
    %v231 = vpack.c.b16 %v207, %v206
    %v232 = vpack.c.b16 %v209, %v208
    %v233 = vpack.c.b16 %v211, %v210
    %v234 = vpack.c.b16 %v213, %v212
    %v235 = vpack.c.b16 %v215, %v214
    %v236 = vpack.c.b16 %v217, %v216
    %v237 = vpack.c.b16 %v219, %v218
    %v238 = vpack.c.b16 %v221, %v220
    %v239 = vpack.c.b16 %v223, %v222
    %v272 = vunpack.c.l.b16 %v144
    %v273 = vunpack.c.l.b16 %v145
    %v274 = vunpack.c.l.b16 %v146
    %v275 = vunpack.c.l.b16 %v147
    %v276 = vunpack.c.l.b16 %v148
    %v277 = vunpack.c.l.b16 %v149
    %v278 = vunpack.c.l.b16 %v150
    %v279 = vunpack.c.l.b16 %v151
    %v280 = vunpack.c.l.b16 %v152
    %v281 = vunpack.c.l.b16 %v153
    %v282 = vunpack.c.l.b16 %v154
    %v283 = vunpack.c.l.b16 %v155
    %v284 = vunpack.c.l.b16 %v156
    %v285 = vunpack.c.l.b16 %v157
    %v286 = vunpack.c.l.b16 %v158
    %v287 = vunpack.c.l.b16 %v159
    %v288 = vpack.c.b16 %v273, %v272
    %v289 = vpack.c.b16 %v275, %v274
    %v290 = vpack.c.b16 %v277, %v276
    %v291 = vpack.c.b16 %v279, %v278
    %v292 = vpack.c.b16 %v281, %v280
    %v293 = vpack.c.b16 %v283, %v282
    %v294 = vpack.c.b16 %v285, %v284
    %v295 = vpack.c.b16 %v287, %v286
    %304 = vmatprep.subr.bf16.mxu0 0
    %305 = vmatpush1.bf16.msra.mxu0 %v295
    %306 = vmatprep.subr.bf16.mxu0 0
    %307 = vmatpush1.bf16.msra.mxu0 %v294
    %308 = vmatprep.subr.bf16.mxu0 0
    %309 = vmatpush1.bf16.msra.mxu0 %v293
    %310 = vmatprep.subr.bf16.mxu0 0
    %311 = vmatpush1.bf16.msra.mxu0 %v292
    %312 = vmatprep.subr.bf16.mxu0 0
    %313 = vmatpush1.bf16.msra.mxu0 %v291
    %314 = vmatprep.subr.bf16.mxu0 0
    %315 = vmatpush1.bf16.msra.mxu0 %v290
    %316 = vmatprep.subr.bf16.mxu0 0
    %317 = vmatpush1.bf16.msra.mxu0 %v289
    %318 = vmatprep.subr.bf16.mxu0 0
    %319 = vmatpush1.bf16.msra.mxu0 %v288
    %320 = vmatprep.subr.bf16.mxu0 0
    %321 = vmatpush2.bf16.msra.mxu0 0
    %322 = vmatprep.subr.bf16.mxu0 0
    %323 = vmatpush2.bf16.msra.mxu0 0
    %324 = vmatprep.subr.bf16.mxu0 0
    %325 = vmatpush2.bf16.msra.mxu0 0
    %326 = vmatprep.subr.bf16.mxu0 0
    %327 = vmatpush2.bf16.msra.mxu0 0
    %328 = vmatprep.subr.bf16.mxu0 0
    %329 = vmatpush2.bf16.msra.mxu0 0
    %330 = vmatprep.subr.bf16.mxu0 0
    %331 = vmatpush2.bf16.msra.mxu0 0
    %332 = vmatprep.subr.bf16.mxu0 0
    %333 = vmatpush2.bf16.msra.mxu0 0
    %334 = vmatprep.subr.bf16.mxu0 0
    %335 = vmatpush2.bf16.msra.mxu0 0
    %336 = vmatprep.mubr.bf16.mxu0 0
    %337 = vmatmul.mubr.bf16.gmra.mxu0 %v224
    %v338 = vpop.f32.mrf.mxu0
    %v339 = vadd.f32 0.0, %v338
    %v340 = vpop.f32.mrf.mxu0
    %v341 = vpop.f32.mrf.mxu0
    %v342 = vadd.f32 0.0, %v341
    %v343 = vpop.f32.mrf.mxu0
    %344 = vmatprep.mubr.bf16.mxu0 0
    %345 = vmatmul.mubr.bf16.gmra.mxu0 %v225
    %v346 = vpop.f32.mrf.mxu0
    %v347 = vadd.f32 0.0, %v346
    %v348 = vpop.f32.mrf.mxu0
    %v349 = vpop.f32.mrf.mxu0
    %v350 = vadd.f32 0.0, %v349
    %v351 = vpop.f32.mrf.mxu0
    %352 = vmatprep.mubr.bf16.mxu0 0
    %353 = vmatmul.mubr.bf16.gmra.mxu0 %v226
    %v354 = vpop.f32.mrf.mxu0
    %v355 = vadd.f32 0.0, %v354
    %v356 = vpop.f32.mrf.mxu0
    %v357 = vpop.f32.mrf.mxu0
    %v358 = vadd.f32 0.0, %v357
    %v359 = vpop.f32.mrf.mxu0
    %360 = vmatprep.mubr.bf16.mxu0 0
    %361 = vmatmul.mubr.bf16.gmra.mxu0 %v227
    %v362 = vpop.f32.mrf.mxu0
    %v363 = vadd.f32 0.0, %v362
    %v364 = vpop.f32.mrf.mxu0
    %v365 = vpop.f32.mrf.mxu0
    %v366 = vadd.f32 0.0, %v365
    %v367 = vpop.f32.mrf.mxu0
    %368 = vmatprep.mubr.bf16.mxu0 0
    %369 = vmatmul.mubr.bf16.gmra.mxu0 %v228
    %v370 = vpop.f32.mrf.mxu0
    %v371 = vadd.f32 0.0, %v370
    %v372 = vpop.f32.mrf.mxu0
    %v373 = vpop.f32.mrf.mxu0
    %v374 = vadd.f32 0.0, %v373
    %v375 = vpop.f32.mrf.mxu0
    %376 = vmatprep.mubr.bf16.mxu0 0
    %377 = vmatmul.mubr.bf16.gmra.mxu0 %v229
    %v378 = vpop.f32.mrf.mxu0
    %v379 = vadd.f32 0.0, %v378
    %v380 = vpop.f32.mrf.mxu0
    %v381 = vpop.f32.mrf.mxu0
    %v382 = vadd.f32 0.0, %v381
    %v383 = vpop.f32.mrf.mxu0
    %384 = vmatprep.mubr.bf16.mxu0 0
    %385 = vmatmul.mubr.bf16.gmra.mxu0 %v230
    %v386 = vpop.f32.mrf.mxu0
    %v387 = vadd.f32 0.0, %v386
    %v388 = vpop.f32.mrf.mxu0
    %v389 = vpop.f32.mrf.mxu0
    %v390 = vadd.f32 0.0, %v389
    %v391 = vpop.f32.mrf.mxu0
    %392 = vmatprep.mubr.bf16.mxu0 0
    %393 = vmatmul.mubr.bf16.gmra.mxu0 %v231
    %v394 = vpop.f32.mrf.mxu0
    %v395 = vadd.f32 0.0, %v394
    %v396 = vpop.f32.mrf.mxu0
    %v397 = vpop.f32.mrf.mxu0
    %v398 = vadd.f32 0.0, %v397
    %v399 = vpop.f32.mrf.mxu0
    %400 = vmatprep.mubr.bf16.mxu0 0
    %401 = vmatmul.mubr.bf16.gmra.mxu0 %v232
    %v402 = vpop.f32.mrf.mxu0
    %v403 = vadd.f32 0.0, %v402
    %v404 = vpop.f32.mrf.mxu0
    %v405 = vpop.f32.mrf.mxu0
    %v406 = vadd.f32 0.0, %v405
    %v407 = vpop.f32.mrf.mxu0
    %408 = vmatprep.mubr.bf16.mxu0 0
    %409 = vmatmul.mubr.bf16.gmra.mxu0 %v233
    %v410 = vpop.f32.mrf.mxu0
    %v411 = vadd.f32 0.0, %v410
    %v412 = vpop.f32.mrf.mxu0
    %v413 = vpop.f32.mrf.mxu0
    %v414 = vadd.f32 0.0, %v413
    %v415 = vpop.f32.mrf.mxu0
    %416 = vmatprep.mubr.bf16.mxu0 0
    %417 = vmatmul.mubr.bf16.gmra.mxu0 %v234
    %v418 = vpop.f32.mrf.mxu0
    %v419 = vadd.f32 0.0, %v418
    %v420 = vpop.f32.mrf.mxu0
    %v421 = vpop.f32.mrf.mxu0
    %v422 = vadd.f32 0.0, %v421
    %v423 = vpop.f32.mrf.mxu0
    %424 = vmatprep.mubr.bf16.mxu0 0
    %425 = vmatmul.mubr.bf16.gmra.mxu0 %v235
    %v426 = vpop.f32.mrf.mxu0
    %v427 = vadd.f32 0.0, %v426
    %v428 = vpop.f32.mrf.mxu0
    %v429 = vpop.f32.mrf.mxu0
    %v430 = vadd.f32 0.0, %v429
    %v431 = vpop.f32.mrf.mxu0
    %432 = vmatprep.mubr.bf16.mxu0 0
    %433 = vmatmul.mubr.bf16.gmra.mxu0 %v236
    %v434 = vpop.f32.mrf.mxu0
    %v435 = vadd.f32 0.0, %v434
    %v436 = vpop.f32.mrf.mxu0
    %v437 = vpop.f32.mrf.mxu0
    %v438 = vadd.f32 0.0, %v437
    %v439 = vpop.f32.mrf.mxu0
    %440 = vmatprep.mubr.bf16.mxu0 0
    %441 = vmatmul.mubr.bf16.gmra.mxu0 %v237
    %v442 = vpop.f32.mrf.mxu0
    %v443 = vadd.f32 0.0, %v442
    %v444 = vpop.f32.mrf.mxu0
    %v445 = vpop.f32.mrf.mxu0
    %v446 = vadd.f32 0.0, %v445
    %v447 = vpop.f32.mrf.mxu0
    %448 = vmatprep.mubr.bf16.mxu0 0
    %449 = vmatmul.mubr.bf16.gmra.mxu0 %v238
    %v450 = vpop.f32.mrf.mxu0
    %v451 = vadd.f32 0.0, %v450
    %v452 = vpop.f32.mrf.mxu0
    %v453 = vpop.f32.mrf.mxu0
    %v454 = vadd.f32 0.0, %v453
    %v455 = vpop.f32.mrf.mxu0
    %456 = vmatprep.mubr.bf16.mxu0 0
    %457 = vmatmul.mubr.bf16.gmra.mxu0 %v239
    %v458 = vpop.f32.mrf.mxu0
    %v459 = vadd.f32 0.0, %v458
    %v460 = vpop.f32.mrf.mxu0
    %v461 = vpop.f32.mrf.mxu0
    %v462 = vadd.f32 0.0, %v461
    %v463 = vpop.f32.mrf.mxu0
    %464 = vdwg.mxu0
    %v465 = vadd.f32 %v80, %v339
    %v466 = vadd.f32 %v81, %v342
    %v467 = vadd.f32 %v82, %v347
    %v468 = vadd.f32 %v83, %v350
    %v469 = vadd.f32 %v84, %v355
    %v470 = vadd.f32 %v85, %v358
    %v471 = vadd.f32 %v86, %v363
    %v472 = vadd.f32 %v87, %v366
    %v473 = vadd.f32 %v88, %v371
    %v474 = vadd.f32 %v89, %v374
    %v475 = vadd.f32 %v90, %v379
    %v476 = vadd.f32 %v91, %v382
    %v477 = vadd.f32 %v92, %v387
    %v478 = vadd.f32 %v93, %v390
    %v479 = vadd.f32 %v94, %v395
    %v480 = vadd.f32 %v95, %v398
    %v481 = vadd.f32 %v96, %v403
    %v482 = vadd.f32 %v97, %v406
    %v483 = vadd.f32 %v98, %v411
    %v484 = vadd.f32 %v99, %v414
    %v485 = vadd.f32 %v100, %v419
    %v486 = vadd.f32 %v101, %v422
    %v487 = vadd.f32 %v102, %v427
    %v488 = vadd.f32 %v103, %v430
    %v489 = vadd.f32 %v104, %v435
    %v490 = vadd.f32 %v105, %v438
    %v491 = vadd.f32 %v106, %v443
    %v492 = vadd.f32 %v107, %v446
    %v493 = vadd.f32 %v108, %v451
    %v494 = vadd.f32 %v109, %v454
    %v495 = vadd.f32 %v110, %v459
    %v496 = vadd.f32 %v111, %v462
    %497 = vst [vmem:[#allocation2] sm:$0xff] %v465
    %498 = vst [vmem:[#allocation2 + $0x8] sm:$0xff] %v466
    %499 = vst [vmem:[#allocation2 + $0x10] sm:$0xff] %v467
    %500 = vst [vmem:[#allocation2 + $0x18] sm:$0xff] %v468
    %501 = vst [vmem:[#allocation2 + $0x20] sm:$0xff] %v469
    %502 = vst [vmem:[#allocation2 + $0x28] sm:$0xff] %v470
    %503 = vst [vmem:[#allocation2 + $0x30] sm:$0xff] %v471
    %504 = vst [vmem:[#allocation2 + $0x38] sm:$0xff] %v472
    %505 = vst [vmem:[#allocation2 + $0x40] sm:$0xff] %v473
    %506 = vst [vmem:[#allocation2 + $0x48] sm:$0xff] %v474
    %507 = vst [vmem:[#allocation2 + $0x50] sm:$0xff] %v475
    %508 = vst [vmem:[#allocation2 + $0x58] sm:$0xff] %v476
    %509 = vst [vmem:[#allocation2 + $0x60] sm:$0xff] %v477
    %510 = vst [vmem:[#allocation2 + $0x68] sm:$0xff] %v478
    %511 = vst [vmem:[#allocation2 + $0x70] sm:$0xff] %v479
    %512 = vst [vmem:[#allocation2 + $0x78] sm:$0xff] %v480
    %513 = vst [vmem:[#allocation2 + $0x80] sm:$0xff] %v481
    %514 = vst [vmem:[#allocation2 + $0x88] sm:$0xff] %v482
    %515 = vst [vmem:[#allocation2 + $0x90] sm:$0xff] %v483
    %516 = vst [vmem:[#allocation2 + $0x98] sm:$0xff] %v484
    %517 = vst [vmem:[#allocation2 + $0xa0] sm:$0xff] %v485
    %518 = vst [vmem:[#allocation2 + $0xa8] sm:$0xff] %v486
    %519 = vst [vmem:[#allocation2 + $0xb0] sm:$0xff] %v487
    %520 = vst [vmem:[#allocation2 + $0xb8] sm:$0xff] %v488
    %521 = vst [vmem:[#allocation2 + $0xc0] sm:$0xff] %v489
    %522 = vst [vmem:[#allocation2 + $0xc8] sm:$0xff] %v490
    %523 = vst [vmem:[#allocation2 + $0xd0] sm:$0xff] %v491
    %524 = vst [vmem:[#allocation2 + $0xd8] sm:$0xff] %v492
    %525 = vst [vmem:[#allocation2 + $0xe0] sm:$0xff] %v493
    %526 = vst [vmem:[#allocation2 + $0xe8] sm:$0xff] %v494
    %527 = vst [vmem:[#allocation2 + $0xf0] sm:$0xff] %v495
    %528 = vst [vmem:[#allocation2 + $0xf8] sm:$0xff] %v496
    // Predicated region
    $region26: #{tpu_custom_call.1} parent=1 // pred_check
      %p529 = pneg %p44
    $region27: #{tpu_custom_call.1} parent=1 // pred_check_branch
      %531 = sbr.rel (%p529) target = $region29
    $region28: #{tpu_custom_call.1} parent=1 // pred_region
      %v532 = vld [vmem:[#allocation2] sm:$0xff]
      %v533 = vld [vmem:[#allocation2 + $0x8] sm:$0xff]
      %v534 = vld [vmem:[#allocation2 + $0x10] sm:$0xff]
      %v535 = vld [vmem:[#allocation2 + $0x18] sm:$0xff]
      %v536 = vld [vmem:[#allocation2 + $0x20] sm:$0xff]
      %v537 = vld [vmem:[#allocation2 + $0x28] sm:$0xff]
      %v538 = vld [vmem:[#allocation2 + $0x30] sm:$0xff]
      %v539 = vld [vmem:[#allocation2 + $0x38] sm:$0xff]
      %v540 = vld [vmem:[#allocation2 + $0x40] sm:$0xff]
      %v541 = vld [vmem:[#allocation2 + $0x48] sm:$0xff]
      %v542 = vld [vmem:[#allocation2 + $0x50] sm:$0xff]
      %v543 = vld [vmem:[#allocation2 + $0x58] sm:$0xff]
      %v544 = vld [vmem:[#allocation2 + $0x60] sm:$0xff]
      %v545 = vld [vmem:[#allocation2 + $0x68] sm:$0xff]
      %v546 = vld [vmem:[#allocation2 + $0x70] sm:$0xff]
      %v547 = vld [vmem:[#allocation2 + $0x78] sm:$0xff]
      %v548 = vld [vmem:[#allocation2 + $0x80] sm:$0xff]
      %v549 = vld [vmem:[#allocation2 + $0x88] sm:$0xff]
      %v550 = vld [vmem:[#allocation2 + $0x90] sm:$0xff]
      %v551 = vld [vmem:[#allocation2 + $0x98] sm:$0xff]
      %v552 = vld [vmem:[#allocation2 + $0xa0] sm:$0xff]
      %v553 = vld [vmem:[#allocation2 + $0xa8] sm:$0xff]
      %v554 = vld [vmem:[#allocation2 + $0xb0] sm:$0xff]
      %v555 = vld [vmem:[#allocation2 + $0xb8] sm:$0xff]
      %v556 = vld [vmem:[#allocation2 + $0xc0] sm:$0xff]
      %v557 = vld [vmem:[#allocation2 + $0xc8] sm:$0xff]
      %v558 = vld [vmem:[#allocation2 + $0xd0] sm:$0xff]
      %v559 = vld [vmem:[#allocation2 + $0xd8] sm:$0xff]
      %v560 = vld [vmem:[#allocation2 + $0xe0] sm:$0xff]
      %v561 = vld [vmem:[#allocation2 + $0xe8] sm:$0xff]
      %v562 = vld [vmem:[#allocation2 + $0xf0] sm:$0xff]
      %v563 = vld [vmem:[#allocation2 + $0xf8] sm:$0xff]
      %v564 = vld [vmem:[%s2] sm:$0x1]
      %v566 = vlaneseq
      %v567 = vshrl.u32 %v566, 7
      %v568 = vsub.s32 0, %v567
      %v569 = vrot.slane %v564, %v568
      %v571 = vadd.f32 %v532, %v569
      %v572 = vadd.f32 %v533, %v569
      %v573 = vadd.f32 %v534, %v569
      %v574 = vadd.f32 %v535, %v569
      %v575 = vadd.f32 %v536, %v569
      %v576 = vadd.f32 %v537, %v569
      %v577 = vadd.f32 %v538, %v569
      %v578 = vadd.f32 %v539, %v569
      %v579 = vadd.f32 %v540, %v569
      %v580 = vadd.f32 %v541, %v569
      %v581 = vadd.f32 %v542, %v569
      %v582 = vadd.f32 %v543, %v569
      %v583 = vadd.f32 %v544, %v569
      %v584 = vadd.f32 %v545, %v569
      %v585 = vadd.f32 %v546, %v569
      %v586 = vadd.f32 %v547, %v569
      %v587 = vadd.f32 %v548, %v569
      %v588 = vadd.f32 %v549, %v569
      %v589 = vadd.f32 %v550, %v569
      %v590 = vadd.f32 %v551, %v569
      %v591 = vadd.f32 %v552, %v569
      %v592 = vadd.f32 %v553, %v569
      %v593 = vadd.f32 %v554, %v569
      %v594 = vadd.f32 %v555, %v569
      %v595 = vadd.f32 %v556, %v569
      %v596 = vadd.f32 %v557, %v569
      %v597 = vadd.f32 %v558, %v569
      %v598 = vadd.f32 %v559, %v569
      %v599 = vadd.f32 %v560, %v569
      %v600 = vadd.f32 %v561, %v569
      %v601 = vadd.f32 %v562, %v569
      %v602 = vadd.f32 %v563, %v569
      %v603 = vpack.c.bf16 %v572, %v571
      %v604 = vpack.c.bf16 %v574, %v573
      %v605 = vpack.c.bf16 %v576, %v575
      %v606 = vpack.c.bf16 %v578, %v577
      %v607 = vpack.c.bf16 %v580, %v579
      %v608 = vpack.c.bf16 %v582, %v581
      %v609 = vpack.c.bf16 %v584, %v583
      %v610 = vpack.c.bf16 %v586, %v585
      %v611 = vpack.c.bf16 %v588, %v587
      %v612 = vpack.c.bf16 %v590, %v589
      %v613 = vpack.c.bf16 %v592, %v591
      %v614 = vpack.c.bf16 %v594, %v593
      %v615 = vpack.c.bf16 %v596, %v595
      %v616 = vpack.c.bf16 %v598, %v597
      %v617 = vpack.c.bf16 %v600, %v599
      %v618 = vpack.c.bf16 %v602, %v601
      %v635 = vunpack.c.l.b16 %v603
      %v636 = vunpack.c.h.b16 %v603
      %v637 = vunpack.c.l.b16 %v604
      %v638 = vunpack.c.h.b16 %v604
      %v639 = vunpack.c.l.b16 %v605
      %v640 = vunpack.c.h.b16 %v605
      %v641 = vunpack.c.l.b16 %v606
      %v642 = vunpack.c.h.b16 %v606
      %v643 = vunpack.c.l.b16 %v607
      %v644 = vunpack.c.h.b16 %v607
      %v645 = vunpack.c.l.b16 %v608
      %v646 = vunpack.c.h.b16 %v608
      %v647 = vunpack.c.l.b16 %v609
      %v648 = vunpack.c.h.b16 %v609
      %v649 = vunpack.c.l.b16 %v610
      %v650 = vunpack.c.h.b16 %v610
      %v651 = vunpack.c.l.b16 %v611
      %v652 = vunpack.c.h.b16 %v611
      %v653 = vunpack.c.l.b16 %v612
      %v654 = vunpack.c.h.b16 %v612
      %v655 = vunpack.c.l.b16 %v613
      %v656 = vunpack.c.h.b16 %v613
      %v657 = vunpack.c.l.b16 %v614
      %v658 = vunpack.c.h.b16 %v614
      %v659 = vunpack.c.l.b16 %v615
      %v660 = vunpack.c.h.b16 %v615
      %v661 = vunpack.c.l.b16 %v616
      %v662 = vunpack.c.h.b16 %v616
      %v663 = vunpack.c.l.b16 %v617
      %v664 = vunpack.c.h.b16 %v617
      %v665 = vunpack.c.l.b16 %v618
      %v666 = vunpack.c.h.b16 %v618
      %v667 = vpack.c.b16 %v635, %v635
      %v668 = vpack.c.b16 %v636, %v636
      %v669 = vpack.c.b16 %v637, %v637
      %v670 = vpack.c.b16 %v638, %v638
      %v671 = vpack.c.b16 %v639, %v639
      %v672 = vpack.c.b16 %v640, %v640
      %v673 = vpack.c.b16 %v641, %v641
      %v674 = vpack.c.b16 %v642, %v642
      %v675 = vpack.c.b16 %v643, %v643
      %v676 = vpack.c.b16 %v644, %v644
      %v677 = vpack.c.b16 %v645, %v645
      %v678 = vpack.c.b16 %v646, %v646
      %v679 = vpack.c.b16 %v647, %v647
      %v680 = vpack.c.b16 %v648, %v648
      %v681 = vpack.c.b16 %v649, %v649
      %v682 = vpack.c.b16 %v650, %v650
      %v683 = vpack.c.b16 %v651, %v651
      %v684 = vpack.c.b16 %v652, %v652
      %v685 = vpack.c.b16 %v653, %v653
      %v686 = vpack.c.b16 %v654, %v654
      %v687 = vpack.c.b16 %v655, %v655
      %v688 = vpack.c.b16 %v656, %v656
      %v689 = vpack.c.b16 %v657, %v657
      %v690 = vpack.c.b16 %v658, %v658
      %v691 = vpack.c.b16 %v659, %v659
      %v692 = vpack.c.b16 %v660, %v660
      %v693 = vpack.c.b16 %v661, %v661
      %v694 = vpack.c.b16 %v662, %v662
      %v695 = vpack.c.b16 %v663, %v663
      %v696 = vpack.c.b16 %v664, %v664
      %v697 = vpack.c.b16 %v665, %v665
      %v698 = vpack.c.b16 %v666, %v666
      %731 = vst [vmem:[#allocation8] sm:$0xf] %v667
      %732 = vst [vmem:[#allocation8 + $0x4] sm:$0xf] %v668
      %733 = vst [vmem:[#allocation8 + $0x8] sm:$0xf] %v669
      %734 = vst [vmem:[#allocation8 + $0xc] sm:$0xf] %v670
      %735 = vst [vmem:[#allocation8 + $0x10] sm:$0xf] %v671
      %736 = vst [vmem:[#allocation8 + $0x14] sm:$0xf] %v672
      %737 = vst [vmem:[#allocation8 + $0x18] sm:$0xf] %v673
      %738 = vst [vmem:[#allocation8 + $0x1c] sm:$0xf] %v674
      %739 = vst [vmem:[#allocation8 + $0x20] sm:$0xf] %v675
      %740 = vst [vmem:[#allocation8 + $0x24] sm:$0xf] %v676
      %741 = vst [vmem:[#allocation8 + $0x28] sm:$0xf] %v677
      %742 = vst [vmem:[#allocation8 + $0x2c] sm:$0xf] %v678
      %743 = vst [vmem:[#allocation8 + $0x30] sm:$0xf] %v679
      %744 = vst [vmem:[#allocation8 + $0x34] sm:$0xf] %v680
      %745 = vst [vmem:[#allocation8 + $0x38] sm:$0xf] %v681
      %746 = vst [vmem:[#allocation8 + $0x3c] sm:$0xf] %v682
      %747 = vst [vmem:[#allocation8 + $0x40] sm:$0xf] %v683
      %748 = vst [vmem:[#allocation8 + $0x44] sm:$0xf] %v684
      %749 = vst [vmem:[#allocation8 + $0x48] sm:$0xf] %v685
      %750 = vst [vmem:[#allocation8 + $0x4c] sm:$0xf] %v686
      %751 = vst [vmem:[#allocation8 + $0x50] sm:$0xf] %v687
      %752 = vst [vmem:[#allocation8 + $0x54] sm:$0xf] %v688
      %753 = vst [vmem:[#allocation8 + $0x58] sm:$0xf] %v689
      %754 = vst [vmem:[#allocation8 + $0x5c] sm:$0xf] %v690
      %755 = vst [vmem:[#allocation8 + $0x60] sm:$0xf] %v691
      %756 = vst [vmem:[#allocation8 + $0x64] sm:$0xf] %v692
      %757 = vst [vmem:[#allocation8 + $0x68] sm:$0xf] %v693
      %758 = vst [vmem:[#allocation8 + $0x6c] sm:$0xf] %v694
      %759 = vst [vmem:[#allocation8 + $0x70] sm:$0xf] %v695
      %760 = vst [vmem:[#allocation8 + $0x74] sm:$0xf] %v696
      %761 = vst [vmem:[#allocation8 + $0x78] sm:$0xf] %v697
      %762 = vst [vmem:[#allocation8 + $0x7c] sm:$0xf] %v698
    $region29: #{tpu_custom_call.1} parent=1 // pred_fallthru
      _
    // Predicated region
    $region30: #{tpu_custom_call.1} parent=1 // pred_check
      _
    $region31: #{tpu_custom_call.1} parent=1 // pred_check_branch
      %764 = sbr.rel (0) target = $region33
    $region32: #{tpu_custom_call.1} parent=1 // pred_region
      %s766 = ssub.s32 2048, 2048
      %767 = vsyncadd [#allocation5], %s766
      %s768 = sshll.u32 [#allocation8], 4
      %s769 = int_to_ptr.vmem [resolvable:$true] %s768
      %774 = dma.vmem_to_hbm [thread:$0]  %s769, 2048, %s3, [#allocation5], 64, 64, 4
    $region33: #{tpu_custom_call.1} parent=1 // pred_fallthru
      _
    // Predicated region
    $region34: #{tpu_custom_call.1} parent=1 // pred_check
      _
    $region35: #{tpu_custom_call.1} parent=1 // pred_check_branch
      %776 = sbr.rel (0) target = $region37
    $region36: #{tpu_custom_call.1} parent=1 // pred_region
      %777 = dma.done [#allocation5], 2048
    $region37: #{tpu_custom_call.1} parent=1 // pred_fallthru
      _
    %778 = vsyncpa [#allocation4], 1
    %779 = vsyncpa [#allocation7], 1
    %780 = vsyncpa [#allocation5], 1

</llo_original>
